<compile_context>
chip_gen: v7x
topology: tpu7x:2x2x1
jax: 0.10.0
libtpu: 0.0.40
codegen_flags: <defaults>
</compile_context>

<pallas_src>
import jax
import jax.numpy as jnp
from jax.experimental import pallas as pl
from jax.experimental.pallas import tpu as pltpu


_MAX_WIDEN = 8                         # max patches fused per stripe matmul
_MAX_WEIGHT_BYTES = 24 << 20           # resident widened-weight cap (v7x-safe)
_RESIDENT_SINGLE_BUF_BYTES = 4 << 20   # single-buffer resident operands above this
_TARGET_BLOCK_BYTES = 4 << 20          # streamed row-block size target


def _cdiv(a, b):
    return -(-a // b)


def _round_up(a, b):
    return _cdiv(a, b) * b


def _proj_kernel(x_ref, w_ref, b_ref, o_ref):
    # x_ref: (tm, K) streamed row block   w_ref: (K, N) resident projection
    # b_ref: (1, N)  resident bias        o_ref: (tm, N) lane-dense output
    acc = jnp.dot(x_ref[...], w_ref[...], preferred_element_type=jnp.float32)
    o_ref[...] = (acc + b_ref[...].astype(jnp.float32)).astype(o_ref.dtype)


def _resident_spec(shape, nbytes):
    """Grid-invariant operand: constant block index (fetched once). Large
    operands are single-buffered so the resident copy costs 1x, not 2x, VMEM."""
    index_map = lambda s: (0, 0)
    if nbytes > _RESIDENT_SINGLE_BUF_BYTES:
        return pl.BlockSpec(shape, index_map, pipeline_mode=pl.Buffered(1))
    return pl.BlockSpec(shape, index_map)


def _project_rows(lhs, w, b, *, out_dtype=None,
                  target_block_bytes=_TARGET_BLOCK_BYTES):
    """out[m, n] = lhs[m, :] @ w[:, n] + b[0, n], row-tiled Pallas matmul.

    Weight/bias stay VMEM-resident; row blocks stream through the software
    pipeline with dense (8,128)-aligned tiles.
    """
    M, K = lhs.shape
    N = w.shape[1]
    out_dtype = out_dtype or lhs.dtype
    isz = jnp.dtype(lhs.dtype).itemsize

    # Row tile: multiple of 8, block ~target bytes, never exceeds (padded) M.
    bytes_per_row = (K + N) * isz
    tm = max(8, min((target_block_bytes // max(bytes_per_row, 1)) // 8 * 8, 2048))
    tm = min(tm, _round_up(M, 8))
    steps = _cdiv(M, tm)
    if steps > 1 and steps % 2:
        # Even step count balances v7x's two TensorCores; shrink tm rather
        # than padding a whole extra (wasted) block.
        tm = max(8, _round_up(_cdiv(M, steps + 1), 8))
        steps = _cdiv(M, tm)
    Mp = steps * tm
    if Mp != M:
        lhs = jnp.pad(lhs, ((0, Mp - M), (0, 0)))

    w_bytes = int(w.size) * jnp.dtype(w.dtype).itemsize
    b_bytes = int(b.size) * jnp.dtype(b.dtype).itemsize
    blk_bytes = tm * (K + N) * isz
    # weight(+bias) (worst case double-buffered) + 2x in block + 2x out block
    # + headroom; clamp to 64 MiB so the limit is valid on every generation.
    vmem_limit = int(min(max(2 * (w_bytes + b_bytes) + 2 * blk_bytes + (4 << 20),
                             16 << 20), 64 << 20))

    cost = pl.CostEstimate(
        flops=2 * Mp * K * N,
        transcendentals=0,
        bytes_accessed=(Mp * K + K * N + N + Mp * N) * isz,
    )

    out = pl.pallas_call(
        _proj_kernel,
        out_shape=jax.ShapeDtypeStruct((Mp, N), out_dtype),
        grid_spec=pl.GridSpec(
            grid=(steps,),
            in_specs=[
                pl.BlockSpec((tm, K), lambda s: (s, 0)),   # streamed rows
                _resident_spec((K, N), w_bytes),           # resident weight
                _resident_spec((1, N), b_bytes),           # resident bias
            ],
            out_specs=pl.BlockSpec((tm, N), lambda s: (s, 0)),
        ),
        compiler_params=pltpu.CompilerParams(
            dimension_semantics=("parallel",),             # independent tiles
            vmem_limit_bytes=vmem_limit,
        ),
        cost_estimate=cost,
    )(lhs, w, b)
    return out[:M]


def _pick_stripe_rows(gh, gw, ph, pw, D, isz):
    """Patch-rows packed per stripe: make the output lane width sr*gw*D a
    multiple of 128 (lane-dense stores) without letting the widened weight
    (sr^2 x bytes) or the widening factor (sr*gw x FLOPs) blow up."""
    base = gw * D
    if base % 128 == 0:
        return 1
    fallback = 1
    for sr in range(1, gh + 1):
        if gh % sr:
            continue
        if sr * gw > _MAX_WIDEN:
            break
        if (sr * ph * gw * pw) * (sr * base) * isz > _MAX_WEIGHT_BYTES:
            break
        if (sr * base) % 128 == 0:
            return sr
        if sr * base >= 128 and fallback * base < 128:
            fallback = sr
    return fallback


def patch_embed(x, conv_w, conv_b, patch_size, *, compute_dtype=None):
    """x: (B, H, W); conv_w: (D, 1, ph, pw); conv_b: (D,). Returns (B, N, D).

    compute_dtype=jnp.bfloat16 opts into bf16 operands (f32 accumulation):
    halves HBM traffic / restores full MXU rate but loosens the 1e-4 check.
    """
    B, H, W = x.shape
    ph, pw = patch_size
    gh, gw = H // ph, W // pw
    N = gh * gw
    D = conv_w.shape[0]

    # Conv2d with stride=patch drops trailing rows/cols that don't fill a patch.
    Hc, Wc = gh * ph, gw * pw
    if (Hc, Wc) != (H, W):
        x = x[:, :Hc, :Wc]

    out_dtype = x.dtype
    cdt = compute_dtype or x.dtype
    isz = jnp.dtype(cdt).itemsize

    sr = _pick_stripe_rows(gh, gw, ph, pw, D, isz)
    widen = sr * gw                       # patches folded into one stripe matmul
    KW = sr * ph * Wc                     # stripe length (sr*ph whole image rows)
    DW = sr * gw * D                      # lane-dense output width per stripe
    w_bytes = KW * DW * isz
    fused_ok = (widen <= _MAX_WIDEN) and (w_bytes <= _MAX_WEIGHT_BYTES)

    if fused_ok:
        # Fused, transpose-free path: the input is only re-viewed with a free
        # contiguous reshape (no XLA transpose / extra HBM pass over x).
        G = B * gh // sr
        x_stripes = x.reshape(G, KW).astype(cdt)

        # Block-diagonal widened projection:
        #   big_w[(r*ph+i)*Wc + gx*pw + j, (r*gw+gx)*D + d] = conv_w[d, 0, i, j]
        w_ijd = conv_w.reshape(D, ph, pw).transpose(1, 2, 0).astype(cdt)  # (ph,pw,D)
        eye_r = jnp.eye(sr, dtype=cdt)
        eye_g = jnp.eye(gw, dtype=cdt)
        big_w = (eye_r[:, None, None, None, :, None, None]
                 * eye_g[None, None, :, None, None, :, None]
                 * w_ijd[None, :, None, :, None, None, :]).reshape(KW, DW)
        bias_wide = jnp.tile(conv_b.astype(jnp.float32), sr * gw).reshape(1, DW)

        out_wide = _project_rows(x_stripes, big_w, bias_wide,
                                 out_dtype=out_dtype)          # (G, DW)
        # Free reshape: (G, sr*gw*D) row-major == (B, gh, gw, D) == (B, N, D).
        return out_wide.reshape(B, N, D)

    # Dense fallback (large gw / large images): one XLA patchify transpose,
    # then the same Pallas projection kernel with a dense (ph*pw, D) weight.
    # Keeps FLOPs at the true conv cost and the resident weight tiny.
    patches = (x.reshape(B, gh, ph, gw, pw)
                 .transpose(0, 1, 3, 2, 4)
                 .reshape(B * N, ph * pw).astype(cdt))
    w_dense = conv_w.reshape(D, ph * pw).T.astype(cdt)
    bias = conv_b.astype(jnp.float32).reshape(1, D)
    out = _project_rows(patches, w_dense, bias, out_dtype=out_dtype)
    return out.reshape(B, N, D)


if __name__ == "__main__":
    # Small shapes consistent with the module:
    # input_size = (16, 16), patch_size = (4, 4) -> grid (4, 4), N = 16, D = 16
    B = 2
    input_size = (16, 16)
    patch_size = (4, 4)
    D = patch_size[0] * patch_size[1]

    key = jax.random.PRNGKey(0)
    kx, kw, kb = jax.random.split(key, 3)

    x = jax.random.normal(kx, (B, *input_size), dtype=jnp.float32)
    conv_w = jax.random.normal(kw, (D, 1, *patch_size), dtype=jnp.float32) * 0.1
    conv_b = jax.random.normal(kb, (D,), dtype=jnp.float32) * 0.1

    out = patch_embed(x, conv_w, conv_b, patch_size)
    out = jax.block_until_ready(out)

    # Reference (plain JAX): strided conv as a patch-wise linear projection.
    ph, pw = patch_size
    gh, gw = input_size[0] // ph, input_size[1] // pw
    ref_patches = (
        x.reshape(B, gh, ph, gw, pw)
         .transpose(0, 1, 3, 2, 4)
         .reshape(B, gh * gw, ph * pw)
    )
    ref = ref_patches @ conv_w.reshape(D, -1).T + conv_b
    assert out.shape == (B, gh * gw, D)
    assert jnp.allclose(out, ref, atol=1e-4), "mismatch vs reference"

    print("KERNEL_OK")
</pallas_src>

<mosaic_0001>
module attributes {stable_mosaic.version = 11 : i64} {
  func.func @_proj_kernel(%arg0: i32, %arg1: memref<8x128xf32, #tpu.memory_space<vmem>>, %arg2: memref<128x128xf32, #tpu.memory_space<vmem>>, %arg3: memref<1x128xf32, #tpu.memory_space<vmem>>, %arg4: memref<8x128xf32, #tpu.memory_space<vmem>>) attributes {dimension_semantics = [#tpu.dimension_semantics<parallel>], iteration_bounds = array<i64: 1>, scalar_prefetch = 0 : i64, scratch_operands = 0 : i64, tpu.core_type = #tpu.core_type<tc>, window_params = [{transform_indices = @transform_0, window_bounds = array<i64: 8, 128>}, {pipeline_mode = #tpu.pipeline_mode<synchronous>, transform_indices = @transform_1, window_bounds = array<i64: 128, 128>}, {pipeline_mode = #tpu.pipeline_mode<synchronous>, transform_indices = @transform_2, window_bounds = array<i64: 1, 128>}, {transform_indices = @transform_3, window_bounds = array<i64: 8, 128>}]} {
    %c0 = arith.constant 0 : index
    %c0_0 = arith.constant 0 : index
    %0 = vector.load %arg1[%c0, %c0_0] : memref<8x128xf32, #tpu.memory_space<vmem>>, vector<8x128xf32>
    %c0_1 = arith.constant 0 : index
    %c0_2 = arith.constant 0 : index
    %1 = vector.load %arg2[%c0_1, %c0_2] : memref<128x128xf32, #tpu.memory_space<vmem>>, vector<128x128xf32>
    %cst = arith.constant dense<0.000000e+00> : vector<8x128xf32>
    %2 = tpu.matmul %0, %1, %cst {dimension_numbers = #tpu.dot_dimension_numbers<[1], [0], [0], [1], [0, 0, 1, 1], [], []>} : vector<8x128xf32>, vector<128x128xf32>, vector<8x128xf32> -> vector<8x128xf32>
    %c0_3 = arith.constant 0 : index
    %c0_4 = arith.constant 0 : index
    %3 = vector.load %arg3[%c0_3, %c0_4] : memref<1x128xf32, #tpu.memory_space<vmem>>, vector<1x128xf32>
    %4 = vector.broadcast %3 : vector<1x128xf32> to vector<8x128xf32>
    %5 = arith.addf %2, %4 : vector<8x128xf32>
    %c0_5 = arith.constant 0 : index
    %c0_6 = arith.constant 0 : index
    %6 = vector.load %arg4[%c0_5, %c0_6] : memref<8x128xf32, #tpu.memory_space<vmem>>, vector<8x128xf32>
    tpu.vector_store %arg4[%c0_5, %c0_6], %5 {strides = array<i32>} : memref<8x128xf32, #tpu.memory_space<vmem>>, vector<8x128xf32>,
    return
  }
  func.func @transform_0(%arg0: i32) -> (i32, i32) {
    %c0_i32 = arith.constant 0 : i32
    %c0_i32_0 = arith.constant 0 : i32
    return %arg0, %c0_i32 : i32, i32
  }
  func.func @transform_1(%arg0: i32) -> (i32, i32) {
    %c0_i32 = arith.constant 0 : i32
    %c0_i32_0 = arith.constant 0 : i32
    %c0_i32_1 = arith.constant 0 : i32
    return %c0_i32, %c0_i32_0 : i32, i32
  }
  func.func @transform_2(%arg0: i32) -> (i32, i32) {
    %c0_i32 = arith.constant 0 : i32
    %c0_i32_0 = arith.constant 0 : i32
    %c0_i32_1 = arith.constant 0 : i32
    return %c0_i32, %c0_i32_0 : i32, i32
  }
  func.func @transform_3(%arg0: i32) -> (i32, i32) {
    %c0_i32 = arith.constant 0 : i32
    %c0_i32_0 = arith.constant 0 : i32
    return %arg0, %c0_i32 : i32, i32
  }
}

</mosaic_0001>

<llo_original>
// kernel: tpu_custom_call.1
$region0: #{tpu_custom_call.1}
  #allocation0 [shape = 'u32[]', space=smem, size = 0x4, offset = 0x4, fixed_abs, tag = 'smem constant byte address 0x4 - core index']
  #allocation1 [shape = 'u32[144,128]{1,0:T(1,128)}', space=vmem, size = 0x12000, scoped, tag = 'internal scratch']
  %s0 = inlined_call_operand.hbm [shape: f32[8,128], index: 0, kind: input, shape index: {}]
  %s1 = inlined_call_operand.hbm [shape: f32[128,128], index: 1, kind: input, shape index: {}]
  %s2 = inlined_call_operand.vmem [shape: f32[1,128], index: 2, kind: input, shape index: {}]
  %s3 = inlined_call_operand.hbm [shape: f32[8,128], index: 3, kind: output, shape index: {}]
  %s4 = sld [smem:[#allocation0]]
  $region30: #{tpu_custom_call.1} parent=0
    _
  %s6 = ssub.s32 1, %s4
  %s7 = scalar_select 0, %s6, %s4
  $region1: #{tpu_custom_call.1} parent=0
    #allocation2 [shape = 'u8[4096]{0}', space=vmem, size = 0x1000, scoped, tag = 'input window, operand 0, single buffered']
    #allocation3 [shape = 's32[1]{0}', space=sflag, size = 0x4, scoped, tag = 'scoped memory for tpu_custom_call.1']
    #allocation4 [shape = 's32[1]{0}', space=sflag, size = 0x4, scoped, tag = 'scoped memory for tpu_custom_call.1']
    #allocation5 [shape = 'u8[65536]{0}', space=vmem, size = 0x10000, scoped, tag = 'input window, operand 1, single buffered']
    #allocation6 [shape = 's32[1]{0}', space=sflag, size = 0x4, scoped, tag = 'scoped memory for tpu_custom_call.1']
    #allocation7 [shape = 'u8[4096]{0}', space=vmem, size = 0x1000, scoped, tag = 'output window, operand 0, single buffered']
    %8 = vsyncpa [#allocation3], 0
    %9 = vsyncpa [#allocation6], 0
    %10 = vsyncpa [#allocation4], 0
    // Predicated region
    $region2: #{tpu_custom_call.1} parent=1 // pred_check
      _
    $region3: #{tpu_custom_call.1} parent=1 // pred_check_branch
      %12 = sbr.rel (0) target = $region5
    $region4: #{tpu_custom_call.1} parent=1 // pred_region
      %s14 = ssub.s32 128, 128
      %15 = vsyncadd [#allocation3], %s14
      %s17 = sshll.u32 [#allocation2], 4
      %s18 = int_to_ptr.vmem [resolvable:$true] %s17
      %20 = dma.hbm_to_vmem [thread:$0]  %s0, 128, %s18, [#allocation3]
    $region5: #{tpu_custom_call.1} parent=1 // pred_fallthru
      _
    // Predicated region
    $region6: #{tpu_custom_call.1} parent=1 // pred_check
      _
    $region7: #{tpu_custom_call.1} parent=1 // pred_check_branch
      %22 = sbr.rel (0) target = $region9
    $region8: #{tpu_custom_call.1} parent=1 // pred_region
      %s24 = ssub.s32 2048, 2048
      %25 = vsyncadd [#allocation6], %s24
      %s26 = sshll.u32 [#allocation5], 4
      %s27 = int_to_ptr.vmem [resolvable:$true] %s26
      %32 = dma.hbm_to_vmem [thread:$0]  %s1, 2048, %s27, [#allocation6], 128, 128, 8
    $region9: #{tpu_custom_call.1} parent=1 // pred_fallthru
      _
    // Predicated region
    $region10: #{tpu_custom_call.1} parent=1 // pred_check
      _
    $region11: #{tpu_custom_call.1} parent=1 // pred_check_branch
      %34 = sbr.rel (0) target = $region13
    $region12: #{tpu_custom_call.1} parent=1 // pred_region
      _
    $region13: #{tpu_custom_call.1} parent=1 // pred_fallthru
      _
    // Predicated region
    $region14: #{tpu_custom_call.1} parent=1 // pred_check
      _
    $region15: #{tpu_custom_call.1} parent=1 // pred_check_branch
      %36 = sbr.rel (0) target = $region17
    $region16: #{tpu_custom_call.1} parent=1 // pred_region
      %37 = dma.done [#allocation3], 128
    $region17: #{tpu_custom_call.1} parent=1 // pred_fallthru
      _
    // Predicated region
    $region18: #{tpu_custom_call.1} parent=1 // pred_check
      _
    $region19: #{tpu_custom_call.1} parent=1 // pred_check_branch
      %39 = sbr.rel (0) target = $region21
    $region20: #{tpu_custom_call.1} parent=1 // pred_region
      %40 = dma.done [#allocation6], 2048
    $region21: #{tpu_custom_call.1} parent=1 // pred_fallthru
      _
    %v41 = vld [vmem:[#allocation2] sm:$0xff]
    %v42 = vld [vmem:[#allocation5] sm:$0xff]
    %v43 = vld [vmem:[#allocation5 + $0x8] sm:$0xff]
    %v44 = vld [vmem:[#allocation5 + $0x10] sm:$0xff]
    %v45 = vld [vmem:[#allocation5 + $0x18] sm:$0xff]
    %v46 = vld [vmem:[#allocation5 + $0x20] sm:$0xff]
    %v47 = vld [vmem:[#allocation5 + $0x28] sm:$0xff]
    %v48 = vld [vmem:[#allocation5 + $0x30] sm:$0xff]
    %v49 = vld [vmem:[#allocation5 + $0x38] sm:$0xff]
    %v50 = vld [vmem:[#allocation5 + $0x40] sm:$0xff]
    %v51 = vld [vmem:[#allocation5 + $0x48] sm:$0xff]
    %v52 = vld [vmem:[#allocation5 + $0x50] sm:$0xff]
    %v53 = vld [vmem:[#allocation5 + $0x58] sm:$0xff]
    %v54 = vld [vmem:[#allocation5 + $0x60] sm:$0xff]
    %v55 = vld [vmem:[#allocation5 + $0x68] sm:$0xff]
    %v56 = vld [vmem:[#allocation5 + $0x70] sm:$0xff]
    %v57 = vld [vmem:[#allocation5 + $0x78] sm:$0xff]
    %v58 = vld [vmem:[%s2] sm:$0x1]
    %v60 = vlaneseq
    %v61 = vshrl.u32 %v60, 7
    %v62 = vsub.s32 0, %v61
    %v63 = vrot.slane %v58, %v62
    %65 = vmatprep.subr.mxu0 0.0
    %66 = vmatpush1.msra.mxu0 %v42
    %67 = vmatprep.subr.mxu0 0.0
    %68 = vmatpush1.msra.mxu0 %v43
    %69 = vmatprep.subr.mxu0 0.0
    %70 = vmatpush1.msra.mxu0 %v44
    %71 = vmatprep.subr.mxu0 0.0
    %72 = vmatpush1.msra.mxu0 %v45
    %73 = vmatprep.subr.mxu0 0.0
    %74 = vmatpush1.msra.mxu0 %v46
    %75 = vmatprep.subr.mxu0 0.0
    %76 = vmatpush1.msra.mxu0 %v47
    %77 = vmatprep.subr.mxu0 0.0
    %78 = vmatpush1.msra.mxu0 %v48
    %79 = vmatprep.subr.mxu0 0.0
    %80 = vmatpush1.msra.mxu0 %v49
    %81 = vmatprep.subr.mxu0 0.0
    %82 = vmatpush1.msra.mxu0 %v50
    %83 = vmatprep.subr.mxu0 0.0
    %84 = vmatpush1.msra.mxu0 %v51
    %85 = vmatprep.subr.mxu0 0.0
    %86 = vmatpush1.msra.mxu0 %v52
    %87 = vmatprep.subr.mxu0 0.0
    %88 = vmatpush1.msra.mxu0 %v53
    %89 = vmatprep.subr.mxu0 0.0
    %90 = vmatpush1.msra.mxu0 %v54
    %91 = vmatprep.subr.mxu0 0.0
    %92 = vmatpush1.msra.mxu0 %v55
    %93 = vmatprep.subr.mxu0 0.0
    %94 = vmatpush1.msra.mxu0 %v56
    %95 = vmatprep.subr.mxu0 0.0
    %96 = vmatpush1.msra.mxu0 %v57
    %97 = vmatprep.subr.mxu0 0.0
    %98 = vmatpush1.msra.mxu0 0.0
    %99 = vmatprep.subr.mxu0 0.0
    %100 = vmatpush1.msra.mxu0 0.0
    %101 = vmatprep.subr.mxu0 0.0
    %102 = vmatpush1.msra.mxu0 0.0
    %103 = vmatprep.subr.mxu0 0.0
    %104 = vmatpush1.msra.mxu0 0.0
    %105 = vmatprep.subr.mxu0 0.0
    %106 = vmatpush1.msra.mxu0 0.0
    %107 = vmatprep.subr.mxu0 0.0
    %108 = vmatpush1.msra.mxu0 0.0
    %109 = vmatprep.subr.mxu0 0.0
    %110 = vmatpush1.msra.mxu0 0.0
    %111 = vmatprep.subr.mxu0 0.0
    %112 = vmatpush1.msra.mxu0 0.0
    %113 = vmatprep.subr.mxu0 0.0
    %114 = vmatpush1.msra.mxu0 0.0
    %115 = vmatprep.subr.mxu0 0.0
    %116 = vmatpush1.msra.mxu0 0.0
    %117 = vmatprep.subr.mxu0 0.0
    %118 = vmatpush1.msra.mxu0 0.0
    %119 = vmatprep.subr.mxu0 0.0
    %120 = vmatpush1.msra.mxu0 0.0
    %121 = vmatprep.subr.mxu0 0.0
    %122 = vmatpush1.msra.mxu0 0.0
    %123 = vmatprep.subr.mxu0 0.0
    %124 = vmatpush1.msra.mxu0 0.0
    %125 = vmatprep.subr.mxu0 0.0
    %126 = vmatpush1.msra.mxu0 0.0
    %127 = vmatprep.subr.mxu0 0.0
    %128 = vmatpush1.msra.mxu0 0.0
    %129 = vmatprep.mubr.f32.mxu0 0.0
    %130 = vmatmul.mubr.f32.gmra.mrb[0].mxu0 %v41
    %v131 = vpop.f32.mrb[0].mxu0
    %v132 = vadd.f32 %v63, %v131
    %v133 = vpop.f32.mrb[0].mxu0
    %134 = vdwg.mxu0
    %135 = vst [vmem:[#allocation7] sm:$0xff] %v132
    // Predicated region
    $region22: #{tpu_custom_call.1} parent=1 // pred_check
      _
    $region23: #{tpu_custom_call.1} parent=1 // pred_check_branch
      %137 = sbr.rel (0) target = $region25
    $region24: #{tpu_custom_call.1} parent=1 // pred_region
      %s139 = ssub.s32 128, 128
      %140 = vsyncadd [#allocation4], %s139
      %s142 = sshll.u32 [#allocation7], 4
      %s143 = int_to_ptr.vmem [resolvable:$true] %s142
      %145 = dma.vmem_to_hbm [thread:$0]  %s143, 128, %s3, [#allocation4]
    $region25: #{tpu_custom_call.1} parent=1 // pred_fallthru
      _
    // Predicated region
    $region26: #{tpu_custom_call.1} parent=1 // pred_check
      _
    $region27: #{tpu_custom_call.1} parent=1 // pred_check_branch
      %147 = sbr.rel (0) target = $region29
    $region28: #{tpu_custom_call.1} parent=1 // pred_region
      %148 = dma.done [#allocation4], 128
    $region29: #{tpu_custom_call.1} parent=1 // pred_fallthru
      _
    %149 = vsyncpa [#allocation3], 1
    %150 = vsyncpa [#allocation6], 1
    %151 = vsyncpa [#allocation4], 1

</llo_original>
